<compile_context>
chip_gen: v5e
topology: v5e:2x2
jax: 0.10.0
libtpu: 0.0.40
codegen_flags: <defaults>
</compile_context>

<pallas_src>
import functools

import jax
import jax.numpy as jnp
from jax.experimental import pallas as pl
from jax.experimental.pallas import tpu as pltpu


def _adain_kernel(x_ref, sb_ref, o_ref, *, eps: float, inv_hw: float):
    # x_ref:  (TB, TC, HW)  full spatial extent per row (no padding)
    # sb_ref: (TB, TC, 2)   packed [scale, bias] per (sample, channel)
    x = x_ref[...].astype(jnp.float32)                        # (TB, TC, HW)

    # Single-pass moments over spatial, accumulated in f32.
    mean = jnp.sum(x, axis=-1, keepdims=True) * inv_hw        # (TB, TC, 1)
    ex2 = jnp.sum(x * x, axis=-1, keepdims=True) * inv_hw     # (TB, TC, 1)
    var = jnp.maximum(ex2 - mean * mean, 0.0)                 # biased variance, clamped
    inv_std = jax.lax.rsqrt(var + eps)                        # (TB, TC, 1)

    # Fused epilogue: scale*(x-mean)*inv_std + bias == x*sc + (bias - sc*mean)
    sc = sb_ref[..., 0:1].astype(jnp.float32) * inv_std       # (TB, TC, 1)
    b = sb_ref[..., 1:2].astype(jnp.float32) - sc * mean      # (TB, TC, 1)
    o_ref[...] = (x * sc + b).astype(o_ref.dtype)


def _pick_tiles(N, C, HW, itemsize, *, target_bytes=4 * 1024 * 1024):
    """Pick (TB, TC) for blocks of shape (TB, TC, HW).

    TC must be a multiple of 8 or equal C (sublane rule); TB is unconstrained.
    Ragged edge blocks along batch/channels are fine: Pallas masks them and
    per-(n, c) statistics are row-independent.  Targets ~target_bytes per
    input block and guarantees >= 2 blocks when possible (v7x dual-TC).
    """
    row_bytes = HW * itemsize                 # one (n, c) spatial row
    per_sample = C * row_bytes

    if per_sample <= target_bytes:
        tb = max(1, min(N, target_bytes // per_sample))
        tc = C
    else:
        # Large feature maps: split channels (InstanceNorm reduces only over
        # HW, so channel splitting is free).  TC must be a multiple of 8.
        tb = 1
        tc = max(8, (target_bytes // row_bytes) // 8 * 8)
        tc = min(tc, C)
        if tc < 8 or C < 8:
            tc = C                            # tiny C: must use the full channel dim
        # TODO(synk): for HW so large that even a (1, 8, HW) block overflows
        # v7x's 64 MiB VMEM, add a third 'arbitrary' spatial grid axis with a
        # two-phase (stats pass then normalize pass) scheme.

    # Guarantee >= 2 blocks so ('parallel','parallel') can shard across both
    # v7x TensorCores (no effect on v5e/v6e which have a single TC).
    if tb >= N and tc >= C:
        if N >= 2:
            tb = (N + 1) // 2
        elif C >= 16:
            tc = max(8, ((C + 1) // 2) // 8 * 8)
    return tb, tc


def adaptive_norm2d(x, style, affine_weight, affine_bias, *, eps: float = 1e-5):
    """x: (N, C, H, W); style: (N, S); affine_weight: (2C, S); affine_bias: (2C,)."""
    N, C, H, W = x.shape
    HW = H * W

    # --- hoisted affine: one batched XLA GEMM for the whole batch ---
    scale_bias = style @ affine_weight.T + affine_bias       # (N, 2C)
    # Pack scale/bias into one small operand: (N, C, 2) -> 3 DMAs per grid step.
    sb = jnp.stack([scale_bias[:, :C], scale_bias[:, C:]], axis=-1)

    x3 = x.reshape(N, C, HW)                                 # no pad/slice round-trip

    TB, TC = _pick_tiles(N, C, HW, x.dtype.itemsize)
    grid = (pl.cdiv(N, TB), pl.cdiv(C, TC))

    out = pl.pallas_call(
        functools.partial(_adain_kernel, eps=eps, inv_hw=1.0 / HW),
        out_shape=jax.ShapeDtypeStruct((N, C, HW), x.dtype),
        grid_spec=pltpu.PrefetchScalarGridSpec(
            num_scalar_prefetch=0,
            grid=grid,
            in_specs=[
                pl.BlockSpec((TB, TC, HW), lambda i, j: (i, j, 0)),  # x
                pl.BlockSpec((TB, TC, 2), lambda i, j: (i, j, 0)),   # packed scale/bias
            ],
            out_specs=pl.BlockSpec((TB, TC, HW), lambda i, j: (i, j, 0)),
        ),
        compiler_params=pltpu.CompilerParams(
            dimension_semantics=("parallel", "parallel"),
            vmem_limit_bytes=48 * 1024 * 1024,
        ),
    )(x3, sb)

    return out.reshape(N, C, H, W)


def _reference(x, style, affine_weight, affine_bias, eps=1e-5):
    C = x.shape[1]
    sb = style @ affine_weight.T + affine_bias               # (N, 2C)
    scale = sb[:, :C][:, :, None, None]
    bias = sb[:, C:][:, :, None, None]
    mean = x.mean(axis=(2, 3), keepdims=True)
    var = ((x - mean) ** 2).mean(axis=(2, 3), keepdims=True)
    norm = (x - mean) / jnp.sqrt(var + eps)
    return scale * norm + bias


if __name__ == "__main__":
    key = jax.random.PRNGKey(0)

    # --- primary shape (matches module defaults at small scale) ---
    N, C, H, W = 2, 4, 16, 16
    STYLE_DIM = 8
    kx, ks, kw, key = jax.random.split(key, 4)
    x = jax.random.normal(kx, (N, C, H, W), dtype=jnp.float32)
    style = jax.random.normal(ks, (N, STYLE_DIM), dtype=jnp.float32)
    # Parameter init per module __init__ (biasfree=False):
    #   affine: nn.Linear(style_dim, 2*channels, bias=False)  -> weight (2C, S)
    #   affine_bias: zeros(2C), first C entries set to 1.0
    affine_weight = 0.1 * jax.random.normal(kw, (2 * C, STYLE_DIM), dtype=jnp.float32)
    affine_bias = jnp.zeros((2 * C,), dtype=jnp.float32).at[:C].set(1.0)

    out = adaptive_norm2d(x, style, affine_weight, affine_bias)
    out = jax.block_until_ready(out)
    ref = _reference(x, style, affine_weight, affine_bias)
    assert out.shape == (N, C, H, W)
    assert jnp.allclose(out, ref, atol=2e-5, rtol=2e-5), "mismatch vs reference"

    # --- odd shape: exercises non-multiple-of-128 HW and ragged batch block ---
    N2, C2, H2, W2 = 3, 16, 5, 7
    kx2, ks2, kw2, key = jax.random.split(key, 4)
    x2 = jax.random.normal(kx2, (N2, C2, H2, W2), dtype=jnp.float32)
    style2 = jax.random.normal(ks2, (N2, STYLE_DIM), dtype=jnp.float32)
    w2 = 0.1 * jax.random.normal(kw2, (2 * C2, STYLE_DIM), dtype=jnp.float32)
    b2 = jnp.zeros((2 * C2,), dtype=jnp.float32).at[:C2].set(1.0)

    out2 = adaptive_norm2d(x2, style2, w2, b2)
    out2 = jax.block_until_ready(out2)
    ref2 = _reference(x2, style2, w2, b2)
    assert jnp.allclose(out2, ref2, atol=2e-5, rtol=2e-5), "mismatch vs reference (odd shape)"

    print("KERNEL_OK")
</pallas_src>

<mosaic_0001>
module attributes {stable_mosaic.version = 11 : i64} {
  func.func @_adain_kernel(%arg0: i32, %arg1: i32, %arg2: memref<1x4x256xf32, #tpu.memory_space<vmem>>, %arg3: memref<1x4x2xf32, #tpu.memory_space<vmem>>, %arg4: memref<1x4x256xf32, #tpu.memory_space<vmem>>) attributes {dimension_semantics = [#tpu.dimension_semantics<parallel>, #tpu.dimension_semantics<parallel>], iteration_bounds = array<i64: 2, 1>, scalar_prefetch = 0 : i64, scratch_operands = 0 : i64, tpu.core_type = #tpu.core_type<tc>, window_params = [{transform_indices = @transform_0, window_bounds = array<i64: 1, 4, 256>}, {transform_indices = @transform_1, window_bounds = array<i64: 1, 4, 2>}, {transform_indices = @transform_2, window_bounds = array<i64: 1, 4, 256>}]} {
    %c0 = arith.constant 0 : index
    %c0_0 = arith.constant 0 : index
    %c0_1 = arith.constant 0 : index
    %0 = vector.load %arg2[%c0, %c0_0, %c0_1] : memref<1x4x256xf32, #tpu.memory_space<vmem>>, vector<1x4x256xf32>
    %cst = arith.constant dense<0.000000e+00> : vector<1x4xf32>
    %1 = vector.multi_reduction <add>, %0, %cst [2] : vector<1x4x256xf32> to vector<1x4xf32>
    %2 = vector.shape_cast %1 : vector<1x4xf32> to vector<1x4x1xf32>
    %cst_2 = arith.constant 3.906250e-03 : f32
    %3 = vector.broadcast %cst_2 : f32 to vector<1x4x1xf32>
    %4 = arith.mulf %2, %3 : vector<1x4x1xf32>
    %5 = arith.mulf %0, %0 : vector<1x4x256xf32>
    %cst_3 = arith.constant dense<0.000000e+00> : vector<1x4xf32>
    %6 = vector.multi_reduction <add>, %5, %cst_3 [2] : vector<1x4x256xf32> to vector<1x4xf32>
    %7 = vector.shape_cast %6 : vector<1x4xf32> to vector<1x4x1xf32>
    %cst_4 = arith.constant 3.906250e-03 : f32
    %8 = vector.broadcast %cst_4 : f32 to vector<1x4x1xf32>
    %9 = arith.mulf %7, %8 : vector<1x4x1xf32>
    %10 = arith.mulf %4, %4 : vector<1x4x1xf32>
    %11 = arith.subf %9, %10 : vector<1x4x1xf32>
    %cst_5 = arith.constant 0.000000e+00 : f32
    %12 = vector.broadcast %cst_5 : f32 to vector<1x4x1xf32>
    %13 = arith.maximumf %11, %12 : vector<1x4x1xf32>
    %cst_6 = arith.constant 9.99999974E-6 : f32
    %14 = vector.broadcast %cst_6 : f32 to vector<1x4x1xf32>
    %15 = arith.addf %13, %14 : vector<1x4x1xf32>
    %16 = math.rsqrt %15 : vector<1x4x1xf32>
    %c0_7 = arith.constant 0 : index
    %c0_8 = arith.constant 0 : index
    %c0_9 = arith.constant 0 : index
    %17 = vector.load %arg3[%c0_7, %c0_8, %c0_9] : memref<1x4x2xf32, #tpu.memory_space<vmem>>, vector<1x4x1xf32>
    %18 = arith.mulf %17, %16 : vector<1x4x1xf32>
    %c0_10 = arith.constant 0 : index
    %c0_11 = arith.constant 0 : index
    %c1 = arith.constant 1 : index
    %19 = vector.load %arg3[%c0_10, %c0_11, %c1] : memref<1x4x2xf32, #tpu.memory_space<vmem>>, vector<1x4x1xf32>
    %20 = arith.mulf %18, %4 : vector<1x4x1xf32>
    %21 = arith.subf %19, %20 : vector<1x4x1xf32>
    %22 = vector.broadcast %18 : vector<1x4x1xf32> to vector<1x4x256xf32>
    %23 = arith.mulf %0, %22 : vector<1x4x256xf32>
    %24 = vector.broadcast %21 : vector<1x4x1xf32> to vector<1x4x256xf32>
    %25 = arith.addf %23, %24 : vector<1x4x256xf32>
    %c0_12 = arith.constant 0 : index
    %c0_13 = arith.constant 0 : index
    %c0_14 = arith.constant 0 : index
    %26 = vector.load %arg4[%c0_12, %c0_13, %c0_14] : memref<1x4x256xf32, #tpu.memory_space<vmem>>, vector<1x4x256xf32>
    tpu.vector_store %arg4[%c0_12, %c0_13, %c0_14], %25 {strides = array<i32>} : memref<1x4x256xf32, #tpu.memory_space<vmem>>, vector<1x4x256xf32>,
    return
  }
  func.func @transform_0(%arg0: i32, %arg1: i32) -> (i32, i32, i32) {
    %c0_i32 = arith.constant 0 : i32
    %c0_i32_0 = arith.constant 0 : i32
    return %arg0, %arg1, %c0_i32 : i32, i32, i32
  }
  func.func @transform_1(%arg0: i32, %arg1: i32) -> (i32, i32, i32) {
    %c0_i32 = arith.constant 0 : i32
    %c0_i32_0 = arith.constant 0 : i32
    return %arg0, %arg1, %c0_i32 : i32, i32, i32
  }
  func.func @transform_2(%arg0: i32, %arg1: i32) -> (i32, i32, i32) {
    %c0_i32 = arith.constant 0 : i32
    %c0_i32_0 = arith.constant 0 : i32
    return %arg0, %arg1, %c0_i32 : i32, i32, i32
  }
}

</mosaic_0001>

<llo_original>
// kernel: tpu_custom_call.1
$region0: #{tpu_custom_call.1}
  #allocation0 [shape = 'u32[]', space=smem, size = 0x4, offset = 0x4, fixed_abs, tag = 'smem constant byte address 0x4 - core index']
  #allocation1 [shape = 'u32[72,128]{1,0:T(1,128)}', space=vmem, size = 0x9000, scoped, tag = 'internal scratch']
  %s0 = inlined_call_operand.hbm [shape: f32[2,4,256], index: 0, kind: input, shape index: {}]
  %s1 = inlined_call_operand.vmem [shape: f32[2,4,2], index: 1, kind: input, shape index: {}]
  %s2 = inlined_call_operand.hbm [shape: f32[2,4,256], index: 2, kind: output, shape index: {}]
  %s3 = sld [smem:[#allocation0]]
  $region45: #{tpu_custom_call.1} parent=0
    _
  %s5 = ssub.s32 1, %s3
  %s6 = scalar_select 0, %s5, %s3
  $region1: #{tpu_custom_call.1} parent=0
    #allocation2 [shape = 'u8[8192]{0}', space=vmem, size = 0x2000, scoped, tag = 'input window, operand 0']
    #allocation3 [shape = 's32[2]{0}', space=sflag, size = 0x8, scoped, tag = 'scoped memory for tpu_custom_call.1']
    #allocation4 [shape = 's32[2]{0}', space=sflag, size = 0x8, scoped, tag = 'scoped memory for tpu_custom_call.1']
    #allocation5 [shape = 'u8[8192]{0}', space=vmem, size = 0x2000, scoped, tag = 'output window, operand 0']
    %7 = vsyncpa [#allocation3], 0
    %s8 = scalar_lea.sflag [#allocation3], 1
    %9 = vsyncpa %s8, 0
    %10 = vsyncpa [#allocation4], 0
    %s11 = scalar_lea.sflag [#allocation4], 1
    %12 = vsyncpa %s11, 0
    loop: start=0, step=1, limit=4
    $region2: #{tpu_custom_call.1} parent=1 // loop_pre_header
      _
    $region3: #{tpu_custom_call.1} parent=1 // loop_header
      %s14 = sphi 0, %s18
      %p15 = scmp.ge.s32.totalorder %s14, 4
      %s21 = sphi 0, %s33
      %s22 = sphi 0, %s29
      %s23 = sphi 0, %s21
      %s24 = sphi 0, %s22
      %s25 = sphi 0, %s23
      %s26 = sphi 0, %s24
      %s38 = sphi 0, %s40
      %s41 = sphi 0, %s38
      %s42 = sphi 0, %s41
      %s58 = sphi 0, %s42
      %s66 = sphi 0, %s68
      %s69 = sphi 0, %s66
      %s70 = sphi 0, %s69
      %s86 = sphi 0, %s70
      %s94 = sphi 0, %s96
      %s97 = sphi 0, %s94
      %s98 = sphi 0, %s97
      %s114 = sphi 0, %s98
    $region4: #{tpu_custom_call.1} parent=1 // loop_header_branch
      %17 = sbr.rel (%p15) target = $region8
    $region5: #{tpu_custom_call.1} parent=1 // loop_body
      %s19 = ssub.s32 %s14, 1
      %s20 = ssub.s32 %s14, 2
      %s27 = sadd.s32 1, %s22
      %p28 = scmp.ge.s32.totalorder %s27, 1
      %s29 = scalar_select %p28, 0, %s27
      %s30 = sadd.s32 1, %s21
      %s31 = scalar_select %p28, %s30, %s21
      %p32 = scmp.ge.s32.totalorder %s31, 2
      %s33 = scalar_select %p32, 0, %s31
      %s34 = ssub.s32 %s21, %s33
      %s35 = ssub.s32 %s22, %s29
      %s36 = sor.u32 %s34, %s35
      %p37 = scmp.eq.s32.totalorder %s36, 0
      %s39 = sadd.s32 %s38, 1
      %s40 = scalar_select %p37, %s38, %s39
      %p43 = pneg %p37
      %p44 = scmp.eq.s32.totalorder %s14, 1
      %p45 = por %p43, %p44
      %p46 = scmp.ne.s32.totalorder %s38, %s41
      %p47 = scmp.eq.s32.totalorder %s14, 0
      %p48 = por %p46, %p47
      %p49 = scmp.ne.s32.totalorder %s38, %s41
      %p50 = scmp.eq.s32.totalorder %s19, 1
      %p51 = por %p49, %p50
      %p52 = scmp.ne.s32.totalorder %s41, %s42
      %p53 = scmp.eq.s32.totalorder %s19, 0
      %p54 = por %p52, %p53
      %p55 = scmp.ne.s32.totalorder %s41, %s42
      %p56 = scmp.eq.s32.totalorder %s20, 1
      %p57 = por %p55, %p56
      %p59 = scmp.ne.s32.totalorder %s42, %s58
      %p60 = scmp.eq.s32.totalorder %s20, 0
      %p61 = por %p59, %p60
      %s62 = ssub.s32 %s21, %s33
      %s63 = ssub.s32 %s22, %s29
      %s64 = sor.u32 %s62, %s63
      %p65 = scmp.eq.s32.totalorder %s64, 0
      %s67 = sadd.s32 %s66, 1
      %s68 = scalar_select %p65, %s66, %s67
      %p71 = pneg %p65
      %p72 = scmp.eq.s32.totalorder %s14, 1
      %p73 = por %p71, %p72
      %p74 = scmp.ne.s32.totalorder %s66, %s69
      %p75 = scmp.eq.s32.totalorder %s14, 0
      %p76 = por %p74, %p75
      %p77 = scmp.ne.s32.totalorder %s66, %s69
      %p78 = scmp.eq.s32.totalorder %s19, 1
      %p79 = por %p77, %p78
      %p80 = scmp.ne.s32.totalorder %s69, %s70
      %p81 = scmp.eq.s32.totalorder %s19, 0
      %p82 = por %p80, %p81
      %p83 = scmp.ne.s32.totalorder %s69, %s70
      %p84 = scmp.eq.s32.totalorder %s20, 1
      %p85 = por %p83, %p84
      %p87 = scmp.ne.s32.totalorder %s70, %s86
      %p88 = scmp.eq.s32.totalorder %s20, 0
      %p89 = por %p87, %p88
      %s90 = ssub.s32 %s21, %s33
      %s91 = ssub.s32 %s22, %s29
      %s92 = sor.u32 %s90, %s91
      %p93 = scmp.eq.s32.totalorder %s92, 0
      %s95 = sadd.s32 %s94, 1
      %s96 = scalar_select %p93, %s94, %s95
      %p99 = pneg %p93
      %p100 = scmp.eq.s32.totalorder %s14, 1
      %p101 = por %p99, %p100
      %p102 = scmp.ne.s32.totalorder %s94, %s97
      %p103 = scmp.eq.s32.totalorder %s14, 0
      %p104 = por %p102, %p103
      %p105 = scmp.ne.s32.totalorder %s94, %s97
      %p106 = scmp.eq.s32.totalorder %s19, 1
      %p107 = por %p105, %p106
      %p108 = scmp.ne.s32.totalorder %s97, %s98
      %p109 = scmp.eq.s32.totalorder %s19, 0
      %p110 = por %p108, %p109
      %p111 = scmp.ne.s32.totalorder %s97, %s98
      %p112 = scmp.eq.s32.totalorder %s20, 1
      %p113 = por %p111, %p112
      %p115 = scmp.ne.s32.totalorder %s98, %s114
      %p116 = scmp.eq.s32.totalorder %s20, 0
      %p117 = por %p115, %p116
      %p118 = scmp.le.s32.totalorder 1, %s14
      %p119 = scmp.lt.s32.totalorder %s14, 3
      %p120 = pnand %p118, %p119
      %p121 = pneg %p120
      // Predicated region
      $region9: #{tpu_custom_call.1} parent=5 // pred_check
        _
      $region10: #{tpu_custom_call.1} parent=5 // pred_check_branch
        %123 = sbr.rel (%p120) target = $region12
      $region11: #{tpu_custom_call.1} parent=5 // pred_region
        %s124 = ssub.s32 %s14, 1
      $region12: #{tpu_custom_call.1} parent=5 // pred_fallthru
        _
      %p125 = scmp.lt.s32.totalorder %s14, 2
      // Predicated region
      $region13: #{tpu_custom_call.1} parent=5 // pred_check
        %p126 = pneg %p125
      $region14: #{tpu_custom_call.1} parent=5 // pred_check_branch
        %128 = sbr.rel (%p126) target = $region16
      $region15: #{tpu_custom_call.1} parent=5 // pred_region
        // Predicated region
        $region17: #{tpu_custom_call.1} parent=15 // pred_check
          %p129 = pneg %p48
        $region18: #{tpu_custom_call.1} parent=15 // pred_check_branch
          %131 = sbr.rel (%p129) target = $region20
        $region19: #{tpu_custom_call.1} parent=15 // pred_region
          %s132 = sand.u32 %s38, 1
          %s133 = scalar_lea.sflag [#allocation3], %s132
          %s134 = sand.u32 %s38, 1
          %s135 = smul.addr %s134, 8
          %s136 = scalar_lea.vmem [#allocation2], %s135
          %138 = vsyncadd %s133, 0
          %s139 = smul.addr %s22, 2
          %s140 = smul.addr %s21, 2
          %s141 = sadd.s32 %s139, %s140
          %s142 = smul.addr %s141, 4
          %s143 = scalar_lea.hbm %s0, %s142
          %s145 = sshll.u32 %s143, 4
          %s146 = int_to_ptr.hbm [resolvable:$true] %s145
          %s147 = sshll.u32 %s136, 4
          %s148 = int_to_ptr.vmem [resolvable:$true] %s147
          %150 = dma.hbm_to_vmem [thread:$0]  %s146, 128, %s148, %s133
        $region20: #{tpu_custom_call.1} parent=15 // pred_fallthru
          _
        // Predicated region
        $region21: #{tpu_custom_call.1} parent=15 // pred_check
          %p151 = pneg %p76
        $region22: #{tpu_custom_call.1} parent=15 // pred_check_branch
          %153 = sbr.rel (%p151) target = $region24
        $region23: #{tpu_custom_call.1} parent=15 // pred_region
          %p154 = scmp.lt.s32.totalorder %s21, 1
          %s155 = scalar_select %p154, %s21, 1
          %p156 = scmp.lt.s32.totalorder %s22, 0
          %s157 = scalar_select %p156, %s22, 0
          %s158 = sadd.s32 %s157, %s155
          %s159 = smul.addr %s158, 4
          %s160 = scalar_lea.vmem %s1, %s159
        $region24: #{tpu_custom_call.1} parent=15 // pred_fallthru
          _
      $region16: #{tpu_custom_call.1} parent=5 // pred_fallthru
        _
      %p161 = scmp.le.s32.totalorder 1, %s14
      %p162 = scmp.lt.s32.totalorder %s14, 3
      %p163 = pnand %p161, %p162
      %p164 = pneg %p163
      // Predicated region
      $region25: #{tpu_custom_call.1} parent=5 // pred_check
        _
      $region26: #{tpu_custom_call.1} parent=5 // pred_check_branch
        %166 = sbr.rel (%p163) target = $region28
      $region27: #{tpu_custom_call.1} parent=5 // pred_region
        %s167 = ssub.s32 %s14, 1
        %s168 = sand.u32 %s41, 1
        %s169 = scalar_lea.sflag [#allocation3], %s168
        %s170 = sand.u32 %s41, 1
        %s171 = smul.addr %s170, 8
        %s172 = scalar_lea.vmem [#allocation2], %s171
        // Predicated region
        $region29: #{tpu_custom_call.1} parent=27 // pred_check
          %p173 = pneg %p54
        $region30: #{tpu_custom_call.1} parent=27 // pred_check_branch
          %175 = sbr.rel (%p173) target = $region32
        $region31: #{tpu_custom_call.1} parent=27 // pred_region
          %177 = dma.done %s169, 128
        $region32: #{tpu_custom_call.1} parent=27 // pred_fallthru
          _
        %s178 = sand.u32 %s41, 1
        %s179 = scalar_lea.sflag [#allocation3], %s178
        %s180 = sand.u32 %s41, 1
        %s181 = smul.addr %s180, 8
        %s182 = scalar_lea.vmem [#allocation2], %s181
        %p183 = pneg %p54
        %p184 = pneg %p51
        %p185 = scmp.lt.s32.totalorder %s23, 1
        %s186 = scalar_select %p185, %s23, 1
        %p187 = scmp.lt.s32.totalorder %s24, 0
        %s188 = scalar_select %p187, %s24, 0
        %s189 = sadd.s32 %s188, %s186
        %s190 = smul.addr %s189, 4
        %s191 = scalar_lea.vmem %s1, %s190
        %p192 = pneg %p82
        %p193 = pneg %p79
        %p194 = pneg %p110
        %p195 = pneg %p107
        %s196 = sand.u32 %s97, 1
        %s197 = scalar_lea.sflag [#allocation4], %s196
        %s198 = sand.u32 %s97, 1
        %s199 = smul.addr %s198, 8
        %s200 = scalar_lea.vmem [#allocation5], %s199
        %p201 = scmp.lt.s32.totalorder %s23, 1
        %s202 = scalar_select %p201, %s23, 1
        %p203 = scmp.lt.s32.totalorder %s24, 0
        %s204 = scalar_select %p203, %s24, 0
        %s205 = sadd.s32 %s204, %s202
        %s206 = smul.addr %s205, 4
        %s207 = scalar_lea.vmem %s1, %s206
        %v208 = vld [vmem:[%s172] sm:$0xff]
        %210 = vst [vmem:[#allocation1] ss:$2 sm:$0xff] %v208
        %v211 = vld.sshfl [vmem:[#allocation1] sm:$0xff pattern:$0x75316420]
        %v212 = vld.sshfl [vmem:[#allocation1 + $0x8] sm:$0xff pattern:$0x75316420]
        %vm215 = vcmask 1043456
        %v216 = vsel %vm215, %v211, 0.0
        %v217 = vsel %vm215, %v212, 0.0
        %v218 = vadd.f32 %v216, %v217
        %219 = vadd.xlane.f32.xlu0 %v218
        %v220 = vpop.xlane.xlu0 %219
        %v221 = vmul.f32 %v220, 0.00390625
        %v222 = vmul.f32 %v208, %v208
        %224 = vst [vmem:[#allocation1] ss:$2 sm:$0xff] %v222
        %v225 = vld.sshfl [vmem:[#allocation1] sm:$0xff pattern:$0x75316420]
        %v226 = vld.sshfl [vmem:[#allocation1 + $0x8] sm:$0xff pattern:$0x75316420]
        %v229 = vsel %vm215, %v225, 0.0
        %v230 = vsel %vm215, %v226, 0.0
        %v231 = vadd.f32 %v229, %v230
        %232 = vadd.xlane.f32.xlu0 %v231
        %v233 = vpop.xlane.xlu0 %232
        %v234 = vmul.f32 %v233, 0.00390625
        %v235 = vmul.f32 %v221, %v221
        %v236 = vsub.f32 %v234, %v235
        %v237 = vmax.f32 %v236, 0.0
        %v238 = vadd.f32 %v237, 1e-05
        %v239 = vrsqrt.pop %v238
        %v240 = vmul.f32 %v239, %v238
        %v241 = vmul.f32 %v240, %v239
        %v242 = vmul.f32 0.5, %v241
        %v243 = vsub.f32 1.5, %v242
        %v244 = vmul.f32 %v239, %v243
        %vm245 = vweird.f32 %v238
        %vm246 = vweird.f32 %v239
        %vm247 = vmor %vm245, %vm246
        %v248 = vsel %vm247, %v239, %v244
        %v249 = vld [vmem:[%s207] sm:$0xf]
        %v250 = vmul.f32 %v249, %v248
        %v251 = vmul.f32 %v250, %v221
        %253 = vrot.lane.b32.xlu0 %v251, 1
        %v254 = vpop.permute.xlu0 %253
        %v256 = vsub.f32 %v249, %v254
        %258 = vset.pattern.permute.xlu0 0
        %259 = vperm.xlu0 %258, %v250
        %v260 = vpop.permute.xlu0 %259
        %v262 = vunpack.c.l.s4 839922192
        %v263 = vunpack.c.0.s8 %v262
        %v264 = vperm.slane %v260, %v263
        %v266 = vmul.f32 %v208, %v264
        %268 = vset.pattern.permute.xlu0 1
        %269 = vperm.xlu0 %268, %v256
        %v270 = vpop.permute.xlu0 %269
        %v272 = vunpack.c.l.s4 839922192
        %v273 = vunpack.c.0.s8 %v272
        %v274 = vperm.slane %v270, %v273
        %v276 = vadd.f32 %v266, %v274
        %277 = vst [vmem:[%s200] sm:$0xff] %v276
        %s278 = sand.u32 %s97, 1
        %s279 = scalar_lea.sflag [#allocation4], %s278
        %s280 = sand.u32 %s97, 1
        %s281 = smul.addr %s280, 8
        %s282 = scalar_lea.vmem [#allocation5], %s281
        // Predicated region
        $region33: #{tpu_custom_call.1} parent=27 // pred_check
          %p283 = pneg %p107
        $region34: #{tpu_custom_call.1} parent=27 // pred_check_branch
          %285 = sbr.rel (%p283) target = $region36
        $region35: #{tpu_custom_call.1} parent=27 // pred_region
          %287 = vsyncadd %s279, 0
          %s288 = smul.addr %s24, 2
          %s289 = smul.addr %s23, 2
          %s290 = sadd.s32 %s288, %s289
          %s291 = smul.addr %s290, 4
          %s292 = scalar_lea.hbm %s2, %s291
          %s294 = sshll.u32 %s282, 4
          %s295 = int_to_ptr.vmem [resolvable:$true] %s294
          %s296 = sshll.u32 %s292, 4
          %s297 = int_to_ptr.hbm [resolvable:$true] %s296
          %299 = dma.vmem_to_hbm [thread:$0]  %s295, 128, %s297, %s279
        $region36: #{tpu_custom_call.1} parent=27 // pred_fallthru
          _
      $region28: #{tpu_custom_call.1} parent=5 // pred_fallthru
        _
      %p300 = scmp.le.s32.totalorder 2, %s14
      // Predicated region
      $region37: #{tpu_custom_call.1} parent=5 // pred_check
        %p301 = pneg %p300
      $region38: #{tpu_custom_call.1} parent=5 // pred_check_branch
        %303 = sbr.rel (%p301) target = $region40
      $region39: #{tpu_custom_call.1} parent=5 // pred_region
        %s304 = ssub.s32 %s14, 2
        // Predicated region
        $region41: #{tpu_custom_call.1} parent=39 // pred_check
          %p305 = pneg %p113
        $region42: #{tpu_custom_call.1} parent=39 // pred_check_branch
          %307 = sbr.rel (%p305) target = $region44
        $region43: #{tpu_custom_call.1} parent=39 // pred_region
          %s308 = sand.u32 %s98, 1
          %s309 = scalar_lea.sflag [#allocation4], %s308
          %s310 = sand.u32 %s98, 1
          %s311 = smul.addr %s310, 8
          %s312 = scalar_lea.vmem [#allocation5], %s311
          %314 = dma.done %s309, 128
        $region44: #{tpu_custom_call.1} parent=39 // pred_fallthru
          _
      $region40: #{tpu_custom_call.1} parent=5 // pred_fallthru
        _
    $region6: #{tpu_custom_call.1} parent=1 // loop_footer
      %s18 = sadd.s32 1, %s14
    $region7: #{tpu_custom_call.1} parent=1 // loop_footer_branch
      %13 = sbr.rel target = $region3
    $region8: #{tpu_custom_call.1} parent=1 // loop_exit
      _
    %315 = vsyncpa [#allocation3], 1
    %s316 = scalar_lea.sflag [#allocation3], 1
    %317 = vsyncpa %s316, 1
    %318 = vsyncpa [#allocation4], 1
    %s319 = scalar_lea.sflag [#allocation4], 1
    %320 = vsyncpa %s319, 1

</llo_original>
